<compile_context>
chip_gen: v7x
topology: tpu7x:2x2x1
jax: 0.10.0
libtpu: 0.0.40
codegen_flags: <defaults>
</compile_context>

<pallas_src>
import functools

import jax
import jax.numpy as jnp
from jax import lax
from jax.experimental import pallas as pl
from jax.experimental.pallas import tpu as pltpu

N_SED = 13
DOA_END = 52
N_FEAT = 65          # 13 sed | 39 doa (unused) | 13 dist

LOSS_WEIGHT = (1.0, 0.1)

_MIN_TILE_ROWS = 1024                   # amortize the ~0.35us per-grid-step overhead
_MAX_TILE_ROWS = 8192                   # (8192,65)->128 lanes = 4 MiB per pipeline buffer
_CHUNK_ROWS = 512                       # inner compute chunk (keeps temporaries tiny)
_VMEM_LIMIT_BYTES = 32 * 1024 * 1024    # > v5e's 16 MiB default; < v7x's 64 MiB physical


def _round_up(x, m):
    return ((x + m - 1) // m) * m


def _num_tensorcores():
    """Best-effort TensorCores per device (width of the megacore 'parallel' axis)."""
    try:
        dev = jax.devices()[0]
        n = getattr(dev, "num_cores", None)
        if n:
            return max(1, int(n))
        kind = str(getattr(dev, "device_kind", "")).lower()
        if any(tag in kind for tag in ("v4", "v5p", "v7", "7x")):
            return 2          # megacore / dual-TC generations
        return 1              # v5e / v6e: single TensorCore
    except Exception:
        return 1


def _sed_dist_loss_kernel(out_ref, tgt_ref, bce_ref, l1_ref, *,
                          n_rows, tile_rows, chunk_rows, approx_recip):
    g = pl.program_id(0)              # megacore split axis ("parallel")
    i = pl.program_id(1)              # reduction axis ("arbitrary", innermost)
    n_inner = pl.num_programs(1)

    @pl.when(i == 0)
    def _init():
        bce_ref[...] = jnp.zeros_like(bce_ref)
        l1_ref[...] = jnp.zeros_like(l1_ref)

    row_start = (g * n_inner + i) * tile_rows
    # Full tiles (the steady state) skip the iota/compare/select tail machinery.
    is_full = row_start + tile_rows <= n_rows

    n_chunks = tile_rows // chunk_rows
    zero = jnp.zeros((1, N_SED), jnp.float32)

    def chunk_body(masked):
        def body(c, carry):
            bce_acc, l1_acc = carry
            r0 = c * chunk_rows
            if not isinstance(r0, int):
                r0 = pl.multiple_of(r0, chunk_rows)
            out = out_ref[pl.ds(r0, chunk_rows), :].astype(jnp.float32)
            tgt = tgt_ref[pl.ds(r0, chunk_rows), :].astype(jnp.float32)

            sed_out = out[:, :N_SED]
            dist_out = out[:, DOA_END:]
            sed_lab = tgt[:, :N_SED]
            dist_lab = tgt[:, DOA_END:] + 1e-08   # matches in-place `dist_label += 1e-08`

            # BCE with PyTorch's log clamp at -100, algebraically fused:
            #   -(y*log x + (1-y)*log(1-x)) == -(y*(log x - log(1-x)) + log(1-x))
            log_x = jnp.maximum(jnp.log(sed_out), -100.0)
            log_1mx = jnp.maximum(jnp.log(1.0 - sed_out), -100.0)
            bce = -(sed_lab * (log_x - log_1mx) + log_1mx)

            # L1(dist_out*sed/dist_lab, dist_lab*sed/dist_lab)
            #   == |(dist_out - dist_lab)| * sed / dist_lab
            if approx_recip:
                # EUP reciprocal (~2^-12 rel err): offloads the VALU but changes
                # loss_dist in the ~1e-4 relative range -> default off.
                inv_dist = pl.reciprocal(dist_lab, approx=True)
            else:
                inv_dist = 1.0 / dist_lab
            l1 = jnp.abs((dist_out - dist_lab) * (sed_lab * inv_dist))

            if masked:
                rows = (row_start + r0
                        + lax.broadcasted_iota(jnp.int32, (chunk_rows, 1), 0))
                valid = rows < n_rows     # select AFTER the math: discards NaNs cleanly
                bce = jnp.where(valid, bce, 0.0)
                l1 = jnp.where(valid, l1, 0.0)

            # Reduce along the row (sublane) axis only; the cross-lane reduce
            # over the 13 channels is deferred to JAX on the tiny partials.
            bce_acc = bce_acc + jnp.sum(bce, axis=0, keepdims=True)
            l1_acc = l1_acc + jnp.sum(l1, axis=0, keepdims=True)
            return bce_acc, l1_acc
        return body

    def run(masked):
        body = chunk_body(masked)
        if n_chunks == 1:
            bce_p, l1_p = body(0, (zero, zero))
        else:
            bce_p, l1_p = lax.fori_loop(0, n_chunks, body, (zero, zero))
        # Single RMW on the resident output block per grid step.
        bce_ref[0:1, :N_SED] += bce_p
        l1_ref[0:1, :N_SED] += l1_p

    @pl.when(is_full)
    def _steady():
        run(masked=False)

    @pl.when(jnp.logical_not(is_full))
    def _tail():
        run(masked=True)


def sed_dist_loss_2024_mape(output, target, loss_weight=LOSS_WEIGHT,
                            max_tile_rows=_MAX_TILE_ROWS,
                            approx_reciprocal=False):
    """output, target: (B, T, 65). Returns (loss_sed, loss_dist, loss) as f32 scalars."""
    B, T, C = output.shape
    assert C == N_FEAT, f"expected {N_FEAT} feature channels, got {C}"
    assert target.shape == output.shape
    N = B * T
    # Free metadata reshape; keep the producer dtype (bf16 inputs halve HBM traffic,
    # the upcast to f32 happens per-chunk inside the kernel).
    out2d = output.reshape(N, C)
    tgt2d = target.reshape(N, C)

    n_cores = _num_tensorcores()

    # Row tile: aim for >= ~4 grid steps per core so DMA/compute overlap, clamp to
    # [1024, max_tile_rows], never (much) exceed the data, keep a multiple of 8.
    want = max(1, -(-N // (n_cores * 4)))
    tile_rows = min(max(want, _MIN_TILE_ROWS), max_tile_rows)
    tile_rows = min(tile_rows, _round_up(N, 8))
    tile_rows = _round_up(tile_rows, 8)
    if tile_rows > _CHUNK_ROWS:
        tile_rows = _round_up(tile_rows, _CHUNK_ROWS)
        chunk_rows = _CHUNK_ROWS
    else:
        chunk_rows = tile_rows

    n_tiles = pl.cdiv(N, tile_rows)
    n_par = max(1, min(n_cores, n_tiles))
    tiles_per_par = pl.cdiv(n_tiles, n_par)
    last_tile = n_tiles - 1

    def in_map(g, i):
        # Clamp so no DMA block starts past the array end; clamped (duplicate)
        # tiles contribute nothing thanks to the in-kernel row mask.
        return (jnp.minimum(g * tiles_per_par + i, last_tile), 0)

    kernel = functools.partial(
        _sed_dist_loss_kernel, n_rows=N, tile_rows=tile_rows,
        chunk_rows=chunk_rows, approx_recip=approx_reciprocal)

    bce_part, l1_part = pl.pallas_call(
        kernel,
        out_shape=(
            jax.ShapeDtypeStruct((n_par, 8, 128), jnp.float32),
            jax.ShapeDtypeStruct((n_par, 8, 128), jnp.float32),
        ),
        grid_spec=pltpu.PrefetchScalarGridSpec(
            num_scalar_prefetch=0,
            grid=(n_par, tiles_per_par),
            in_specs=[
                pl.BlockSpec((tile_rows, C), in_map),
                pl.BlockSpec((tile_rows, C), in_map),
            ],
            out_specs=[
                pl.BlockSpec((None, 8, 128), lambda g, i: (g, 0, 0)),
                pl.BlockSpec((None, 8, 128), lambda g, i: (g, 0, 0)),
            ],
        ),
        compiler_params=pltpu.CompilerParams(
            dimension_semantics=("parallel", "arbitrary"),
            vmem_limit_bytes=_VMEM_LIMIT_BYTES,
        ),
    )(out2d, tgt2d)

    # Only [:, 0, :13] of each partial block is nonzero (blocks are zero-initialized
    # in-kernel), so a plain sum collapses the per-core partials.
    n_elems = jnp.float32(N * N_SED)
    loss_sed = jnp.sum(bce_part) / n_elems
    loss_dist = jnp.sum(l1_part) / n_elems
    loss = loss_weight[0] * loss_sed + loss_weight[1] * loss_dist
    return loss_sed, loss_dist, loss


def _make_inputs(key, B, T):
    k1, k2, k3, k4 = jax.random.split(key, 4)
    # sed predictions must live in (0, 1) for BCE -> sigmoid of random logits.
    sed_pred = jax.nn.sigmoid(jax.random.normal(k1, (B, T, N_SED)))
    doa_pred = jax.random.normal(k2, (B, T, DOA_END - N_SED))
    dist_pred = jax.nn.softplus(jax.random.normal(k3, (B, T, N_FEAT - DOA_END))) + 0.1
    output = jnp.concatenate([sed_pred, doa_pred, dist_pred], axis=-1).astype(jnp.float32)

    sed_lab = (jax.random.uniform(k4, (B, T, N_SED)) > 0.5).astype(jnp.float32)
    doa_lab = jax.random.normal(k2, (B, T, DOA_END - N_SED))
    dist_lab = jax.nn.softplus(jax.random.normal(k1, (B, T, N_FEAT - DOA_END))) + 0.1
    target = jnp.concatenate([sed_lab, doa_lab, dist_lab], axis=-1).astype(jnp.float32)
    return output, target


def _ref(o, t, loss_weight=LOSS_WEIGHT):
    so, do_ = o[:, :, :N_SED], o[:, :, DOA_END:]
    sl, dl = t[:, :, :N_SED], t[:, :, DOA_END:] + 1e-08
    bce = -(sl * jnp.maximum(jnp.log(so), -100.0)
            + (1 - sl) * jnp.maximum(jnp.log(1 - so), -100.0))
    l1 = jnp.abs(do_ * sl / dl - dl * sl / dl)
    ls, ld = jnp.mean(bce), jnp.mean(l1)
    return ls, ld, loss_weight[0] * ls + loss_weight[1] * ld


def _check(got, ref, tag):
    for g, r in zip(got, ref):
        assert jnp.allclose(g, r, rtol=1e-4, atol=1e-6), (tag, g, r)


if __name__ == "__main__":
    key = jax.random.PRNGKey(0)
    k_small, k_tiled, k_big = jax.random.split(key, 3)

    # --- small single-tile, single-chunk case (B=2, T=8) ---
    output, target = _make_inputs(k_small, B=2, T=8)
    got = sed_dist_loss_2024_mape(output, target)
    jax.block_until_ready(got)
    _check(got, _ref(output, target), "small")

    # --- multi-tile case exercising the reduction grid, clamped duplicate tiles,
    #     and the tail-row mask (N=200 rows, tile forced to 64 -> 4 tiles) ---
    output2, target2 = _make_inputs(k_tiled, B=2, T=100)
    got2 = sed_dist_loss_2024_mape(output2, target2, max_tile_rows=64)
    jax.block_until_ready(got2)
    _check(got2, _ref(output2, target2), "tiled")

    # --- default-tile case exercising the inner chunk loop (tile=1024, chunk=512)
    #     plus a partial tail tile (N=1500 rows -> 2 tiles) ---
    output3, target3 = _make_inputs(k_big, B=3, T=500)
    got3 = sed_dist_loss_2024_mape(output3, target3)
    jax.block_until_ready(got3)
    _check(got3, _ref(output3, target3), "chunked")

    print("KERNEL_OK")
</pallas_src>

<mosaic_0001>
module attributes {stable_mosaic.version = 11 : i64} {
  func.func @_sed_dist_loss_kernel(%arg0: i32, %arg1: i32, %arg2: memref<16x65xf32, #tpu.memory_space<vmem>>, %arg3: memref<16x65xf32, #tpu.memory_space<vmem>>, %arg4: memref<1x8x128xf32, #tpu.memory_space<vmem>>, %arg5: memref<1x8x128xf32, #tpu.memory_space<vmem>>) attributes {dimension_semantics = [#tpu.dimension_semantics<parallel>, #tpu.dimension_semantics<arbitrary>], iteration_bounds = array<i64: 1, 1>, scalar_prefetch = 0 : i64, scratch_operands = 0 : i64, tpu.core_type = #tpu.core_type<tc>, window_params = [{transform_indices = @transform_0, window_bounds = array<i64: 16, 65>}, {transform_indices = @transform_1, window_bounds = array<i64: 16, 65>}, {transform_indices = @transform_2, window_bounds = array<i64: 1, 8, 128>}, {transform_indices = @transform_3, window_bounds = array<i64: 1, 8, 128>}]} {
    %c0_i32 = arith.constant 0 : i32
    %0 = arith.cmpi eq, %arg1, %c0_i32 : i32
    %1 = arith.extui %0 : i1 to i32
    %c0_i32_0 = arith.constant 0 : i32
    %2 = arith.cmpi ne, %1, %c0_i32_0 : i32
    scf.if %2 {
      %cst_5 = arith.constant 0.000000e+00 : f32
      %14 = vector.broadcast %cst_5 : f32 to vector<8x128xf32>
      %c0 = arith.constant 0 : index
      %c0_6 = arith.constant 0 : index
      %c0_7 = arith.constant 0 : index
      %15 = vector.load %arg4[%c0, %c0_6, %c0_7] : memref<1x8x128xf32, #tpu.memory_space<vmem>>, vector<1x8x128xf32>
      %16 = vector.shape_cast %15 : vector<1x8x128xf32> to vector<8x128xf32>
      %17 = vector.shape_cast %14 : vector<8x128xf32> to vector<1x8x128xf32>
      tpu.vector_store %arg4[%c0, %c0_6, %c0_7], %17 {strides = array<i32>} : memref<1x8x128xf32, #tpu.memory_space<vmem>>, vector<1x8x128xf32>,
      %cst_8 = arith.constant 0.000000e+00 : f32
      %18 = vector.broadcast %cst_8 : f32 to vector<8x128xf32>
      %c0_9 = arith.constant 0 : index
      %c0_10 = arith.constant 0 : index
      %c0_11 = arith.constant 0 : index
      %19 = vector.load %arg5[%c0_9, %c0_10, %c0_11] : memref<1x8x128xf32, #tpu.memory_space<vmem>>, vector<1x8x128xf32>
      %20 = vector.shape_cast %19 : vector<1x8x128xf32> to vector<8x128xf32>
      %21 = vector.shape_cast %18 : vector<8x128xf32> to vector<1x8x128xf32>
      tpu.vector_store %arg5[%c0_9, %c0_10, %c0_11], %21 {strides = array<i32>} : memref<1x8x128xf32, #tpu.memory_space<vmem>>, vector<1x8x128xf32>,
    } else {
    }
    %c1_i32 = arith.constant 1 : i32
    %3 = arith.muli %arg0, %c1_i32 : i32
    %4 = arith.addi %3, %arg1 : i32
    %c16_i32 = arith.constant 16 : i32
    %5 = arith.muli %4, %c16_i32 : i32
    %c16_i32_1 = arith.constant 16 : i32
    %6 = arith.addi %5, %c16_i32_1 : i32
    %c16_i32_2 = arith.constant 16 : i32
    %7 = arith.cmpi sle, %6, %c16_i32_2 : i32
    %cst = arith.constant 0.000000e+00 : f32
    %8 = vector.broadcast %cst : f32 to vector<1x13xf32>
    %9 = arith.extui %7 : i1 to i32
    %c0_i32_3 = arith.constant 0 : i32
    %10 = arith.cmpi ne, %9, %c0_i32_3 : i32
    scf.if %10 {
      %c0 = arith.constant 0 : index
      %c0_5 = arith.constant 0 : index
      %14 = vector.load %arg2[%c0, %c0_5] : memref<16x65xf32, #tpu.memory_space<vmem>>, vector<16x65xf32>
      %c0_6 = arith.constant 0 : index
      %c0_7 = arith.constant 0 : index
      %15 = vector.load %arg3[%c0_6, %c0_7] : memref<16x65xf32, #tpu.memory_space<vmem>>, vector<16x65xf32>
      %16 = vector.extract_strided_slice %14 {offsets = [0, 0], sizes = [16, 13], strides = [1, 1]} : vector<16x65xf32> to vector<16x13xf32>
      %17 = vector.extract_strided_slice %14 {offsets = [0, 52], sizes = [16, 13], strides = [1, 1]} : vector<16x65xf32> to vector<16x13xf32>
      %18 = vector.extract_strided_slice %15 {offsets = [0, 0], sizes = [16, 13], strides = [1, 1]} : vector<16x65xf32> to vector<16x13xf32>
      %19 = vector.extract_strided_slice %15 {offsets = [0, 52], sizes = [16, 13], strides = [1, 1]} : vector<16x65xf32> to vector<16x13xf32>
      %cst_8 = arith.constant 9.99999993E-9 : f32
      %20 = vector.broadcast %cst_8 : f32 to vector<16x13xf32>
      %21 = arith.addf %19, %20 : vector<16x13xf32>
      %22 = math.log %16 : vector<16x13xf32>
      %cst_9 = arith.constant -1.000000e+02 : f32
      %23 = vector.broadcast %cst_9 : f32 to vector<16x13xf32>
      %24 = arith.maximumf %22, %23 : vector<16x13xf32>
      %cst_10 = arith.constant 1.000000e+00 : f32
      %25 = vector.broadcast %cst_10 : f32 to vector<16x13xf32>
      %26 = arith.subf %25, %16 : vector<16x13xf32>
      %27 = math.log %26 : vector<16x13xf32>
      %cst_11 = arith.constant -1.000000e+02 : f32
      %28 = vector.broadcast %cst_11 : f32 to vector<16x13xf32>
      %29 = arith.maximumf %27, %28 : vector<16x13xf32>
      %30 = arith.subf %24, %29 : vector<16x13xf32>
      %31 = arith.mulf %18, %30 : vector<16x13xf32>
      %32 = arith.addf %31, %29 : vector<16x13xf32>
      %cst_12 = arith.constant 0.000000e+00 : f32
      %33 = vector.broadcast %cst_12 : f32 to vector<16x13xf32>
      %34 = arith.subf %33, %32 : vector<16x13xf32>
      %cst_13 = arith.constant 1.000000e+00 : f32
      %35 = vector.broadcast %cst_13 : f32 to vector<16x13xf32>
      %36 = arith.divf %35, %21 : vector<16x13xf32>
      %37 = arith.subf %17, %21 : vector<16x13xf32>
      %38 = arith.mulf %18, %36 : vector<16x13xf32>
      %39 = arith.mulf %37, %38 : vector<16x13xf32>
      %40 = math.absf %39 : vector<16x13xf32>
      %cst_14 = arith.constant dense<0.000000e+00> : vector<13xf32>
      %41 = vector.multi_reduction <add>, %34, %cst_14 [0] : vector<16x13xf32> to vector<13xf32>
      %42 = vector.shape_cast %41 : vector<13xf32> to vector<1x13xf32>
      %43 = arith.addf %8, %42 : vector<1x13xf32>
      %cst_15 = arith.constant dense<0.000000e+00> : vector<13xf32>
      %44 = vector.multi_reduction <add>, %40, %cst_15 [0] : vector<16x13xf32> to vector<13xf32>
      %45 = vector.shape_cast %44 : vector<13xf32> to vector<1x13xf32>
      %46 = arith.addf %8, %45 : vector<1x13xf32>
      %c0_16 = arith.constant 0 : index
      %c0_17 = arith.constant 0 : index
      %c0_18 = arith.constant 0 : index
      %47 = vector.load %arg4[%c0_16, %c0_17, %c0_18] : memref<1x8x128xf32, #tpu.memory_space<vmem>>, vector<1x1x13xf32>
      %48 = vector.shape_cast %47 : vector<1x1x13xf32> to vector<1x13xf32>
      %49 = arith.addf %48, %43 : vector<1x13xf32>
      %c0_19 = arith.constant 0 : index
      %c0_20 = arith.constant 0 : index
      %c0_21 = arith.constant 0 : index
      %50 = vector.load %arg4[%c0_19, %c0_20, %c0_21] : memref<1x8x128xf32, #tpu.memory_space<vmem>>, vector<1x1x13xf32>
      %51 = vector.shape_cast %50 : vector<1x1x13xf32> to vector<1x13xf32>
      %52 = vector.shape_cast %49 : vector<1x13xf32> to vector<1x1x13xf32>
      tpu.vector_store %arg4[%c0_19, %c0_20, %c0_21], %52 {strides = array<i32>} : memref<1x8x128xf32, #tpu.memory_space<vmem>>, vector<1x1x13xf32>,
      %c0_22 = arith.constant 0 : index
      %c0_23 = arith.constant 0 : index
      %c0_24 = arith.constant 0 : index
      %53 = vector.load %arg5[%c0_22, %c0_23, %c0_24] : memref<1x8x128xf32, #tpu.memory_space<vmem>>, vector<1x1x13xf32>
      %54 = vector.shape_cast %53 : vector<1x1x13xf32> to vector<1x13xf32>
      %55 = arith.addf %54, %46 : vector<1x13xf32>
      %c0_25 = arith.constant 0 : index
      %c0_26 = arith.constant 0 : index
      %c0_27 = arith.constant 0 : index
      %56 = vector.load %arg5[%c0_25, %c0_26, %c0_27] : memref<1x8x128xf32, #tpu.memory_space<vmem>>, vector<1x1x13xf32>
      %57 = vector.shape_cast %56 : vector<1x1x13xf32> to vector<1x13xf32>
      %58 = vector.shape_cast %55 : vector<1x13xf32> to vector<1x1x13xf32>
      tpu.vector_store %arg5[%c0_25, %c0_26, %c0_27], %58 {strides = array<i32>} : memref<1x8x128xf32, #tpu.memory_space<vmem>>, vector<1x1x13xf32>,
    } else {
    }
    %true = arith.constant true
    %11 = arith.xori %7, %true : i1
    %12 = arith.extui %11 : i1 to i32
    %c0_i32_4 = arith.constant 0 : i32
    %13 = arith.cmpi ne, %12, %c0_i32_4 : i32
    scf.if %13 {
      %c0 = arith.constant 0 : index
      %c0_5 = arith.constant 0 : index
      %14 = vector.load %arg2[%c0, %c0_5] : memref<16x65xf32, #tpu.memory_space<vmem>>, vector<16x65xf32>
      %c0_6 = arith.constant 0 : index
      %c0_7 = arith.constant 0 : index
      %15 = vector.load %arg3[%c0_6, %c0_7] : memref<16x65xf32, #tpu.memory_space<vmem>>, vector<16x65xf32>
      %16 = vector.extract_strided_slice %14 {offsets = [0, 0], sizes = [16, 13], strides = [1, 1]} : vector<16x65xf32> to vector<16x13xf32>
      %17 = vector.extract_strided_slice %14 {offsets = [0, 52], sizes = [16, 13], strides = [1, 1]} : vector<16x65xf32> to vector<16x13xf32>
      %18 = vector.extract_strided_slice %15 {offsets = [0, 0], sizes = [16, 13], strides = [1, 1]} : vector<16x65xf32> to vector<16x13xf32>
      %19 = vector.extract_strided_slice %15 {offsets = [0, 52], sizes = [16, 13], strides = [1, 1]} : vector<16x65xf32> to vector<16x13xf32>
      %cst_8 = arith.constant 9.99999993E-9 : f32
      %20 = vector.broadcast %cst_8 : f32 to vector<16x13xf32>
      %21 = arith.addf %19, %20 : vector<16x13xf32>
      %22 = math.log %16 : vector<16x13xf32>
      %cst_9 = arith.constant -1.000000e+02 : f32
      %23 = vector.broadcast %cst_9 : f32 to vector<16x13xf32>
      %24 = arith.maximumf %22, %23 : vector<16x13xf32>
      %cst_10 = arith.constant 1.000000e+00 : f32
      %25 = vector.broadcast %cst_10 : f32 to vector<16x13xf32>
      %26 = arith.subf %25, %16 : vector<16x13xf32>
      %27 = math.log %26 : vector<16x13xf32>
      %cst_11 = arith.constant -1.000000e+02 : f32
      %28 = vector.broadcast %cst_11 : f32 to vector<16x13xf32>
      %29 = arith.maximumf %27, %28 : vector<16x13xf32>
      %30 = arith.subf %24, %29 : vector<16x13xf32>
      %31 = arith.mulf %18, %30 : vector<16x13xf32>
      %32 = arith.addf %31, %29 : vector<16x13xf32>
      %cst_12 = arith.constant 0.000000e+00 : f32
      %33 = vector.broadcast %cst_12 : f32 to vector<16x13xf32>
      %34 = arith.subf %33, %32 : vector<16x13xf32>
      %cst_13 = arith.constant 1.000000e+00 : f32
      %35 = vector.broadcast %cst_13 : f32 to vector<16x13xf32>
      %36 = arith.divf %35, %21 : vector<16x13xf32>
      %37 = arith.subf %17, %21 : vector<16x13xf32>
      %38 = arith.mulf %18, %36 : vector<16x13xf32>
      %39 = arith.mulf %37, %38 : vector<16x13xf32>
      %40 = math.absf %39 : vector<16x13xf32>
      %c0_i32_14 = arith.constant 0 : i32
      %41 = arith.addi %5, %c0_i32_14 : i32
      %42 = tpu.iota {dimensions = array<i32: 0>} : vector<16x1xi32>
      %43 = vector.broadcast %41 : i32 to vector<16x1xi32>
      %44 = arith.addi %43, %42 : vector<16x1xi32>
      %c16_i32_15 = arith.constant 16 : i32
      %45 = vector.broadcast %c16_i32_15 : i32 to vector<16x1xi32>
      %46 = arith.cmpi slt, %44, %45 : vector<16x1xi32>
      %cst_16 = arith.constant 0.000000e+00 : f32
      %47 = vector.shape_cast %46 : vector<16x1xi1> to vector<16x1xi1>
      %48 = vector.broadcast %47 : vector<16x1xi1> to vector<16x13xi1>
      %49 = vector.broadcast %cst_16 : f32 to vector<16x13xf32>
      %50 = arith.select %48, %34, %49 : vector<16x13xi1>, vector<16x13xf32>
      %cst_17 = arith.constant 0.000000e+00 : f32
      %51 = vector.shape_cast %46 : vector<16x1xi1> to vector<16x1xi1>
      %52 = vector.broadcast %51 : vector<16x1xi1> to vector<16x13xi1>
      %53 = vector.broadcast %cst_17 : f32 to vector<16x13xf32>
      %54 = arith.select %52, %40, %53 : vector<16x13xi1>, vector<16x13xf32>
      %cst_18 = arith.constant dense<0.000000e+00> : vector<13xf32>
      %55 = vector.multi_reduction <add>, %50, %cst_18 [0] : vector<16x13xf32> to vector<13xf32>
      %56 = vector.shape_cast %55 : vector<13xf32> to vector<1x13xf32>
      %57 = arith.addf %8, %56 : vector<1x13xf32>
      %cst_19 = arith.constant dense<0.000000e+00> : vector<13xf32>
      %58 = vector.multi_reduction <add>, %54, %cst_19 [0] : vector<16x13xf32> to vector<13xf32>
      %59 = vector.shape_cast %58 : vector<13xf32> to vector<1x13xf32>
      %60 = arith.addf %8, %59 : vector<1x13xf32>
      %c0_20 = arith.constant 0 : index
      %c0_21 = arith.constant 0 : index
      %c0_22 = arith.constant 0 : index
      %61 = vector.load %arg4[%c0_20, %c0_21, %c0_22] : memref<1x8x128xf32, #tpu.memory_space<vmem>>, vector<1x1x13xf32>
      %62 = vector.shape_cast %61 : vector<1x1x13xf32> to vector<1x13xf32>
      %63 = arith.addf %62, %57 : vector<1x13xf32>
      %c0_23 = arith.constant 0 : index
      %c0_24 = arith.constant 0 : index
      %c0_25 = arith.constant 0 : index
      %64 = vector.load %arg4[%c0_23, %c0_24, %c0_25] : memref<1x8x128xf32, #tpu.memory_space<vmem>>, vector<1x1x13xf32>
      %65 = vector.shape_cast %64 : vector<1x1x13xf32> to vector<1x13xf32>
      %66 = vector.shape_cast %63 : vector<1x13xf32> to vector<1x1x13xf32>
      tpu.vector_store %arg4[%c0_23, %c0_24, %c0_25], %66 {strides = array<i32>} : memref<1x8x128xf32, #tpu.memory_space<vmem>>, vector<1x1x13xf32>,
      %c0_26 = arith.constant 0 : index
      %c0_27 = arith.constant 0 : index
      %c0_28 = arith.constant 0 : index
      %67 = vector.load %arg5[%c0_26, %c0_27, %c0_28] : memref<1x8x128xf32, #tpu.memory_space<vmem>>, vector<1x1x13xf32>
      %68 = vector.shape_cast %67 : vector<1x1x13xf32> to vector<1x13xf32>
      %69 = arith.addf %68, %60 : vector<1x13xf32>
      %c0_29 = arith.constant 0 : index
      %c0_30 = arith.constant 0 : index
      %c0_31 = arith.constant 0 : index
      %70 = vector.load %arg5[%c0_29, %c0_30, %c0_31] : memref<1x8x128xf32, #tpu.memory_space<vmem>>, vector<1x1x13xf32>
      %71 = vector.shape_cast %70 : vector<1x1x13xf32> to vector<1x13xf32>
      %72 = vector.shape_cast %69 : vector<1x13xf32> to vector<1x1x13xf32>
      tpu.vector_store %arg5[%c0_29, %c0_30, %c0_31], %72 {strides = array<i32>} : memref<1x8x128xf32, #tpu.memory_space<vmem>>, vector<1x1x13xf32>,
    } else {
    }
    return
  }
  func.func @transform_0(%arg0: i32, %arg1: i32) -> (i32, i32) {
    %c1_i32 = arith.constant 1 : i32
    %0 = arith.muli %arg0, %c1_i32 : i32
    %1 = arith.addi %0, %arg1 : i32
    %c0_i32 = arith.constant 0 : i32
    %2 = arith.minsi %1, %c0_i32 : i32
    %c0_i32_0 = arith.constant 0 : i32
    %c0_i32_1 = arith.constant 0 : i32
    return %2, %c0_i32_0 : i32, i32
  }
  func.func @transform_1(%arg0: i32, %arg1: i32) -> (i32, i32) {
    %c1_i32 = arith.constant 1 : i32
    %0 = arith.muli %arg0, %c1_i32 : i32
    %1 = arith.addi %0, %arg1 : i32
    %c0_i32 = arith.constant 0 : i32
    %2 = arith.minsi %1, %c0_i32 : i32
    %c0_i32_0 = arith.constant 0 : i32
    %c0_i32_1 = arith.constant 0 : i32
    return %2, %c0_i32_0 : i32, i32
  }
  func.func @transform_2(%arg0: i32, %arg1: i32) -> (i32, i32, i32) {
    %c0_i32 = arith.constant 0 : i32
    %c0_i32_0 = arith.constant 0 : i32
    %c0_i32_1 = arith.constant 0 : i32
    return %arg0, %c0_i32, %c0_i32_0 : i32, i32, i32
  }
  func.func @transform_3(%arg0: i32, %arg1: i32) -> (i32, i32, i32) {
    %c0_i32 = arith.constant 0 : i32
    %c0_i32_0 = arith.constant 0 : i32
    %c0_i32_1 = arith.constant 0 : i32
    return %arg0, %c0_i32, %c0_i32_0 : i32, i32, i32
  }
}

</mosaic_0001>

<llo_original>
// kernel: tpu_custom_call.1
$region0: #{tpu_custom_call.1}
  #allocation0 [shape = 'u32[]', space=smem, size = 0x4, offset = 0x4, fixed_abs, tag = 'smem constant byte address 0x4 - core index']
  #allocation1 [shape = 'u32[144,128]{1,0:T(1,128)}', space=vmem, size = 0x12000, scoped, tag = 'internal scratch']
  %s0 = inlined_call_operand.hbm [shape: f32[16,65], index: 0, kind: input, shape index: {}]
  %s1 = inlined_call_operand.hbm [shape: f32[16,65], index: 1, kind: input, shape index: {}]
  %s2 = inlined_call_operand.hbm [shape: f32[1,8,128], index: 2, kind: output, shape index: {0}]
  %s3 = inlined_call_operand.hbm [shape: f32[1,8,128], index: 3, kind: output, shape index: {1}]
  %4 = xla_tuple %s2, %s3
  %s5 = sld [smem:[#allocation0]]
  $region46: #{tpu_custom_call.1} parent=0
    _
  %s7 = ssub.s32 1, %s5
  %s8 = scalar_select 0, %s7, %s5
  $region1: #{tpu_custom_call.1} parent=0
    #allocation2 [shape = 'u8[8192]{0}', space=vmem, size = 0x2000, scoped, tag = 'input window, operand 0, single buffered']
    #allocation3 [shape = 's32[1]{0}', space=sflag, size = 0x4, scoped, tag = 'scoped memory for tpu_custom_call.1']
    #allocation4 [shape = 's32[1]{0}', space=sflag, size = 0x4, scoped, tag = 'scoped memory for tpu_custom_call.1']
    #allocation5 [shape = 'u8[8192]{0}', space=vmem, size = 0x2000, scoped, tag = 'input window, operand 1, single buffered']
    #allocation6 [shape = 's32[1]{0}', space=sflag, size = 0x4, scoped, tag = 'scoped memory for tpu_custom_call.1']
    #allocation7 [shape = 'u8[4096]{0}', space=vmem, size = 0x1000, scoped, tag = 'output window, operand 0, single buffered']
    #allocation8 [shape = 'u8[4096]{0}', space=vmem, size = 0x1000, scoped, tag = 'output window, operand 1, single buffered']
    #allocation9 [shape = 's32[1]{0}', space=sflag, size = 0x4, scoped, tag = 'scoped memory for tpu_custom_call.1']
    %9 = vsyncpa [#allocation3], 0
    %10 = vsyncpa [#allocation6], 0
    %11 = vsyncpa [#allocation4], 0
    %12 = vsyncpa [#allocation9], 0
    // Predicated region
    $region2: #{tpu_custom_call.1} parent=1 // pred_check
      _
    $region3: #{tpu_custom_call.1} parent=1 // pred_check_branch
      %14 = sbr.rel (0) target = $region5
    $region4: #{tpu_custom_call.1} parent=1 // pred_region
      %s15 = sadd.s32 0, 0
      %p16 = scmp.lt.s32.totalorder %s15, 0
      %s17 = scalar_select %p16, %s15, 0
      %s18 = smul.u32 2, %s17
      %s20 = ssub.s32 256, 256
      %21 = vsyncadd [#allocation3], %s20
      %s22 = smul.addr %s18, 128
      %s23 = scalar_lea.hbm %s0, %s22
      %s24 = sshll.u32 [#allocation2], 4
      %s25 = int_to_ptr.vmem [resolvable:$true] %s24
      %30 = dma.hbm_to_vmem [thread:$0]  %s23, 256, %s25, [#allocation3], 128, 128, 8
    $region5: #{tpu_custom_call.1} parent=1 // pred_fallthru
      _
    // Predicated region
    $region6: #{tpu_custom_call.1} parent=1 // pred_check
      _
    $region7: #{tpu_custom_call.1} parent=1 // pred_check_branch
      %32 = sbr.rel (0) target = $region9
    $region8: #{tpu_custom_call.1} parent=1 // pred_region
      %s33 = sadd.s32 0, 0
      %p34 = scmp.lt.s32.totalorder %s33, 0
      %s35 = scalar_select %p34, %s33, 0
      %s36 = smul.u32 2, %s35
      %s38 = ssub.s32 256, 256
      %39 = vsyncadd [#allocation6], %s38
      %s40 = smul.addr %s36, 128
      %s41 = scalar_lea.hbm %s1, %s40
      %s42 = sshll.u32 [#allocation5], 4
      %s43 = int_to_ptr.vmem [resolvable:$true] %s42
      %48 = dma.hbm_to_vmem [thread:$0]  %s41, 256, %s43, [#allocation6], 128, 128, 8
    $region9: #{tpu_custom_call.1} parent=1 // pred_fallthru
      _
    // Predicated region
    $region10: #{tpu_custom_call.1} parent=1 // pred_check
      _
    $region11: #{tpu_custom_call.1} parent=1 // pred_check_branch
      %50 = sbr.rel (0) target = $region13
    $region12: #{tpu_custom_call.1} parent=1 // pred_region
      %51 = dma.done [#allocation3], 256
    $region13: #{tpu_custom_call.1} parent=1 // pred_fallthru
      _
    // Predicated region
    $region14: #{tpu_custom_call.1} parent=1 // pred_check
      _
    $region15: #{tpu_custom_call.1} parent=1 // pred_check_branch
      %53 = sbr.rel (0) target = $region17
    $region16: #{tpu_custom_call.1} parent=1 // pred_region
      %54 = dma.done [#allocation6], 256
    $region17: #{tpu_custom_call.1} parent=1 // pred_fallthru
      _
    %s55 = sadd.s32 0, 0
    %p56 = scmp.lt.s32.totalorder %s55, 0
    %s57 = scalar_select %p56, %s55, 0
    %s58 = smul.u32 2, %s57
    %s59 = sadd.s32 0, 0
    %p60 = scmp.lt.s32.totalorder %s59, 0
    %s61 = scalar_select %p60, %s59, 0
    %s62 = smul.u32 2, %s61
    %p63 = scmp.eq.s32.totalorder 0, 0
    // Predicated region
    $region18: #{tpu_custom_call.1} parent=1 // pred_check
      %p64 = pneg %p63
    $region19: #{tpu_custom_call.1} parent=1 // pred_check_branch
      %66 = sbr.rel (%p64) target = $region21
    $region20: #{tpu_custom_call.1} parent=1 // pred_region
      %67 = vst [vmem:[#allocation7] sm:$0xff] 0.0
      %68 = vst [vmem:[#allocation8] sm:$0xff] 0.0
    $region21: #{tpu_custom_call.1} parent=1 // pred_fallthru
      _
    %s69 = sadd.s32 0, 0
    %s70 = smul.u32 %s69, 16
    %s71 = sadd.s32 %s70, 16
    %p72 = scmp.le.s32.totalorder %s71, 16
    // Predicated region
    $region22: #{tpu_custom_call.1} parent=1 // pred_check
      %p73 = pneg %p72
    $region23: #{tpu_custom_call.1} parent=1 // pred_check_branch
      %75 = sbr.rel (%p73) target = $region25
    $region24: #{tpu_custom_call.1} parent=1 // pred_region
      %v76 = vld [vmem:[#allocation2] sm:$0xff]
      %v77 = vld [vmem:[#allocation2 + $0x8] sm:$0xff]
      %v78 = vld [vmem:[#allocation5] sm:$0xff]
      %v79 = vld [vmem:[#allocation5 + $0x8] sm:$0xff]
      %v80 = vadd.f32 %v78, 1e-08
      %v81 = vadd.f32 %v79, 1e-08
      %v82 = vlog2.pop %v76
      %v83 = vmul.f32 %v82, 0.6931472
      %v84 = vlog2.pop %v77
      %v85 = vmul.f32 %v84, 0.6931472
      %v86 = vmax.f32 %v83, -100.0
      %v87 = vmax.f32 %v85, -100.0
      %v88 = vsub.f32 1.0, %v76
      %v89 = vsub.f32 1.0, %v77
      %v90 = vlog2.pop %v88
      %v91 = vmul.f32 %v90, 0.6931472
      %v92 = vlog2.pop %v89
      %v93 = vmul.f32 %v92, 0.6931472
      %v94 = vmax.f32 %v91, -100.0
      %v95 = vmax.f32 %v93, -100.0
      %v96 = vsub.f32 %v86, %v94
      %v97 = vsub.f32 %v87, %v95
      %v98 = vmul.f32 %v78, %v96
      %v99 = vmul.f32 %v79, %v97
      %v100 = vadd.f32 %v98, %v94
      %v101 = vadd.f32 %v99, %v95
      %v102 = vsub.f32 0.0, %v100
      %v103 = vsub.f32 0.0, %v101
      %v104 = vrcp.pop %v80
      %v105 = vmul.f32 1.0, %v104
      %v106 = vrcp.pop %v81
      %v107 = vmul.f32 1.0, %v106
      %v108 = vsub.f32 %v76, %v80
      %v109 = vsub.f32 %v77, %v81
      %112 = vrot.lane.b32.xlu0 %v105, 76
      %v113 = vpop.permute.xlu0 %112
      %114 = vrot.lane.b32.xlu0 %v107, 76
      %v115 = vpop.permute.xlu0 %114
      %v118 = vmul.f32 %v78, %v113
      %v119 = vmul.f32 %v79, %v115
      %122 = vrot.lane.b32.xlu0 %v118, 52
      %v123 = vpop.permute.xlu0 %122
      %124 = vrot.lane.b32.xlu0 %v119, 52
      %v125 = vpop.permute.xlu0 %124
      %v128 = vmul.f32 %v108, %v123
      %v129 = vmul.f32 %v109, %v125
      %v130 = vand.u32 2147483647, %v128
      %v131 = vand.u32 2147483647, %v129
      %vm132 = vcmask 105472
      %v133 = vsel %vm132, %v102, 0.0
      %v134 = vsel %vm132, %v103, 0.0
      %v135 = vadd.f32 %v133, %v134
      %v136 = vrot.slane %v135, 4
      %v137 = vadd.f32 %v135, %v136
      %v138 = vrot.slane %v137, 2
      %v139 = vadd.f32 %v137, %v138
      %v140 = vrot.slane %v139, 1
      %v141 = vadd.f32 %v139, %v140
      %v142 = vadd.f32 %v141, 0.0
      %vm143 = vcmask 531872
      %v144 = vsel %vm143, %v130, 0.0
      %v145 = vsel %vm143, %v131, 0.0
      %v146 = vadd.f32 %v144, %v145
      %v147 = vrot.slane %v146, 4
      %v148 = vadd.f32 %v146, %v147
      %v149 = vrot.slane %v148, 2
      %v150 = vadd.f32 %v148, %v149
      %v151 = vrot.slane %v150, 1
      %v152 = vadd.f32 %v150, %v151
      %v153 = vadd.f32 %v152, 0.0
      %v154 = vld [vmem:[#allocation7] sm:$0x1]
      %v155 = vadd.f32 %v154, %v142
      %vm156 = vcmask 98304
      %157 = vst.msk [vmem:[#allocation7] sm:$0x1] %vm156, %v155
      %v158 = vld [vmem:[#allocation8] sm:$0x1]
      %160 = vrot.lane.b32.xlu0 %v153, 76
      %v161 = vpop.permute.xlu0 %160
      %v163 = vadd.f32 %v158, %v161
      %164 = vst.msk [vmem:[#allocation8] sm:$0x1] %vm156, %v163
    $region25: #{tpu_custom_call.1} parent=1 // pred_fallthru
      _
    %p165 = scmp.gt.s32.totalorder %s71, 16
    // Predicated region
    $region26: #{tpu_custom_call.1} parent=1 // pred_check
      %p166 = pneg %p165
    $region27: #{tpu_custom_call.1} parent=1 // pred_check_branch
      %168 = sbr.rel (%p166) target = $region29
    $region28: #{tpu_custom_call.1} parent=1 // pred_region
      %v169 = vld [vmem:[#allocation2] sm:$0xff]
      %v170 = vld [vmem:[#allocation2 + $0x8] sm:$0xff]
      %v171 = vld [vmem:[#allocation5] sm:$0xff]
      %v172 = vld [vmem:[#allocation5 + $0x8] sm:$0xff]
      %v173 = vadd.f32 %v171, 1e-08
      %v174 = vadd.f32 %v172, 1e-08
      %v175 = vlog2.pop %v169
      %v176 = vmul.f32 %v175, 0.6931472
      %v177 = vlog2.pop %v170
      %v178 = vmul.f32 %v177, 0.6931472
      %v179 = vmax.f32 %v176, -100.0
      %v180 = vmax.f32 %v178, -100.0
      %v181 = vsub.f32 1.0, %v169
      %v182 = vsub.f32 1.0, %v170
      %v183 = vlog2.pop %v181
      %v184 = vmul.f32 %v183, 0.6931472
      %v185 = vlog2.pop %v182
      %v186 = vmul.f32 %v185, 0.6931472
      %v187 = vmax.f32 %v184, -100.0
      %v188 = vmax.f32 %v186, -100.0
      %v189 = vsub.f32 %v179, %v187
      %v190 = vsub.f32 %v180, %v188
      %v191 = vmul.f32 %v171, %v189
      %v192 = vmul.f32 %v172, %v190
      %v193 = vadd.f32 %v191, %v187
      %v194 = vadd.f32 %v192, %v188
      %v195 = vsub.f32 0.0, %v193
      %v196 = vsub.f32 0.0, %v194
      %v197 = vrcp.pop %v173
      %v198 = vmul.f32 1.0, %v197
      %v199 = vrcp.pop %v174
      %v200 = vmul.f32 1.0, %v199
      %v201 = vsub.f32 %v169, %v173
      %v202 = vsub.f32 %v170, %v174
      %205 = vrot.lane.b32.xlu0 %v198, 76
      %v206 = vpop.permute.xlu0 %205
      %207 = vrot.lane.b32.xlu0 %v200, 76
      %v208 = vpop.permute.xlu0 %207
      %v211 = vmul.f32 %v171, %v206
      %v212 = vmul.f32 %v172, %v208
      %215 = vrot.lane.b32.xlu0 %v211, 52
      %v216 = vpop.permute.xlu0 %215
      %217 = vrot.lane.b32.xlu0 %v212, 52
      %v218 = vpop.permute.xlu0 %217
      %v221 = vmul.f32 %v201, %v216
      %v222 = vmul.f32 %v202, %v218
      %v223 = vand.u32 2147483647, %v221
      %v224 = vand.u32 2147483647, %v222
      %v225 = vlaneseq
      %v226 = vshrl.u32 %v225, 7
      %v227 = vadd.s32 %v226, 8
      %v228 = vstv %s70
      %v229 = vadd.s32 %v228, %v226
      %v230 = vadd.s32 %v228, %v227
      %vm231 = vcmp.lt.s32.totalorder %v229, 16
      %vm232 = vcmp.lt.s32.totalorder %v230, 16
      %v233 = vsel %vm231, 1, 0
      %v234 = vsel %vm232, 1, 0
      %vm235 = vcmp.eq.s32.totalorder %v233, 1
      %vm236 = vcmp.eq.s32.totalorder %v234, 1
      %v237 = vsel %vm235, %v195, 0.0
      %v238 = vsel %vm236, %v196, 0.0
      %v239 = vsel %vm235, %v223, 0.0
      %v240 = vsel %vm236, %v224, 0.0
      %vm241 = vcmask 105472
      %v242 = vsel %vm241, %v237, 0.0
      %v243 = vsel %vm241, %v238, 0.0
      %v244 = vadd.f32 %v242, %v243
      %v245 = vrot.slane %v244, 4
      %v246 = vadd.f32 %v244, %v245
      %v247 = vrot.slane %v246, 2
      %v248 = vadd.f32 %v246, %v247
      %v249 = vrot.slane %v248, 1
      %v250 = vadd.f32 %v248, %v249
      %v251 = vadd.f32 %v250, 0.0
      %vm252 = vcmask 531872
      %v253 = vsel %vm252, %v239, 0.0
      %v254 = vsel %vm252, %v240, 0.0
      %v255 = vadd.f32 %v253, %v254
      %v256 = vrot.slane %v255, 4
      %v257 = vadd.f32 %v255, %v256
      %v258 = vrot.slane %v257, 2
      %v259 = vadd.f32 %v257, %v258
      %v260 = vrot.slane %v259, 1
      %v261 = vadd.f32 %v259, %v260
      %v262 = vadd.f32 %v261, 0.0
      %v263 = vld [vmem:[#allocation7] sm:$0x1]
      %v264 = vadd.f32 %v263, %v251
      %vm265 = vcmask 98304
      %266 = vst.msk [vmem:[#allocation7] sm:$0x1] %vm265, %v264
      %v267 = vld [vmem:[#allocation8] sm:$0x1]
      %269 = vrot.lane.b32.xlu0 %v262, 76
      %v270 = vpop.permute.xlu0 %269
      %v272 = vadd.f32 %v267, %v270
      %273 = vst.msk [vmem:[#allocation8] sm:$0x1] %vm265, %v272
    $region29: #{tpu_custom_call.1} parent=1 // pred_fallthru
      _
    // Predicated region
    $region30: #{tpu_custom_call.1} parent=1 // pred_check
      _
    $region31: #{tpu_custom_call.1} parent=1 // pred_check_branch
      %275 = sbr.rel (0) target = $region33
    $region32: #{tpu_custom_call.1} parent=1 // pred_region
      %s277 = ssub.s32 128, 128
      %278 = vsyncadd [#allocation4], %s277
      %s280 = sshll.u32 [#allocation7], 4
      %s281 = int_to_ptr.vmem [resolvable:$true] %s280
      %283 = dma.vmem_to_hbm [thread:$0]  %s281, 128, %s2, [#allocation4]
    $region33: #{tpu_custom_call.1} parent=1 // pred_fallthru
      _
    // Predicated region
    $region34: #{tpu_custom_call.1} parent=1 // pred_check
      _
    $region35: #{tpu_custom_call.1} parent=1 // pred_check_branch
      %285 = sbr.rel (0) target = $region37
    $region36: #{tpu_custom_call.1} parent=1 // pred_region
      %s287 = ssub.s32 128, 128
      %288 = vsyncadd [#allocation9], %s287
      %s290 = sshll.u32 [#allocation8], 4
      %s291 = int_to_ptr.vmem [resolvable:$true] %s290
      %293 = dma.vmem_to_hbm [thread:$0]  %s291, 128, %s3, [#allocation9]
    $region37: #{tpu_custom_call.1} parent=1 // pred_fallthru
      _
    // Predicated region
    $region38: #{tpu_custom_call.1} parent=1 // pred_check
      _
    $region39: #{tpu_custom_call.1} parent=1 // pred_check_branch
      %295 = sbr.rel (0) target = $region41
    $region40: #{tpu_custom_call.1} parent=1 // pred_region
      %296 = dma.done [#allocation4], 128
    $region41: #{tpu_custom_call.1} parent=1 // pred_fallthru
      _
    // Predicated region
    $region42: #{tpu_custom_call.1} parent=1 // pred_check
      _
    $region43: #{tpu_custom_call.1} parent=1 // pred_check_branch
      %298 = sbr.rel (0) target = $region45
    $region44: #{tpu_custom_call.1} parent=1 // pred_region
      %299 = dma.done [#allocation9], 128
    $region45: #{tpu_custom_call.1} parent=1 // pred_fallthru
      _
    %300 = vsyncpa [#allocation3], 1
    %301 = vsyncpa [#allocation6], 1
    %302 = vsyncpa [#allocation4], 1
    %303 = vsyncpa [#allocation9], 1

</llo_original>
